<compile_context>
chip_gen: v5e
topology: v5e:2x2
jax: 0.10.0
libtpu: 0.0.40
codegen_flags: <defaults>
</compile_context>

<pallas_src>
import functools

import jax
import jax.numpy as jnp
from jax import lax
from jax.experimental import pallas as pl
from jax.experimental.pallas import tpu as pltpu


def _round_up(x, m):
    return (x + m - 1) // m * m


def _pick_tile(dim_pad, cap):
    """Largest multiple of 128 that divides dim_pad and is <= cap."""
    best = 128
    t = 256
    while t <= min(cap, dim_pad):
        if dim_pad % t == 0:
            best = t
        t += 128
    return best


def _choose_tiles(batch, in_pad, out_pad):
    b_pad = _round_up(max(batch, 1), 8)     # f32 sublane multiple
    tm = min(256, b_pad)
    b_pad = _round_up(b_pad, tm)
    tn = _pick_tile(out_pad, 512)
    tk = _pick_tile(in_pad, 512)
    # v7x has two TensorCores: make sure the parallel (i, j) grid has >= 2
    # tiles when possible so both cores get work (harmless on v5e/v6e).
    if (b_pad // tm) * (out_pad // tn) < 2 and out_pad >= 256:
        tn = _pick_tile(out_pad, tn // 2)
    return b_pad, tm, tn, tk


def _noisy_kernel(x_ref, wmu_ref, wsig_ref, ein_ref, eout_ref, b_ref, o_ref):
    """o[i,j] = sum_k x[i,k] @ (W_mu + W_sigma * eps_out eps_in^T)[j,k]^T + b."""
    k = pl.program_id(2)
    # Rank-1 noise, fused on the VPU per (tn, tk) weight tile.
    w = wmu_ref[...] + wsig_ref[...] * (eout_ref[...] * ein_ref[...])
    # Contract last dims of x (tm, tk) and w (tn, tk): MXU consumes the RHS
    # contracted on its last dim, no in-kernel transpose of the weight tile.
    part = lax.dot_general(
        x_ref[...], w,
        dimension_numbers=(((1,), (1,)), ((), ())),
        preferred_element_type=jnp.float32)

    @pl.when(k == 0)
    def _():
        o_ref[...] = part + b_ref[...]

    @pl.when(k > 0)
    def _():
        o_ref[...] = o_ref[...] + part


def _mu_kernel(x_ref, wmu_ref, b_ref, o_ref):
    """Eval fast path: mu-only weights, no sigma/epsilon streams."""
    k = pl.program_id(2)
    part = lax.dot_general(
        x_ref[...], wmu_ref[...],
        dimension_numbers=(((1,), (1,)), ((), ())),
        preferred_element_type=jnp.float32)

    @pl.when(k == 0)
    def _():
        o_ref[...] = part + b_ref[...]

    @pl.when(k > 0)
    def _():
        o_ref[...] = o_ref[...] + part


@functools.partial(jax.jit, static_argnames=("out_features", "training"))
def noisy_linear(x, params, out_features, training=True):
    """Forward pass. x: (B, in_features) -> (B, out_features).

    `params` are the PADDED params from pad_noisy_linear_params; in a real
    training loop that padded layout is the canonical parameter storage, so
    the weight matrices are never re-padded per call.
    """
    batch, in_f = x.shape
    out_pad, in_pad = params["weight_mu"].shape
    b_pad, tm, tn, tk = _choose_tiles(batch, in_pad, out_pad)

    # Noisy bias is only out_features elements: fuse it in the wrapper and
    # pass a single (1, out_pad) row to the kernel.
    if training:
        bias = params["bias_mu"] + params["bias_sigma"] * params["bias_eps"]
    else:
        bias = params["bias_mu"]

    xp = x.astype(jnp.float32)
    xp = jnp.pad(xp, ((0, b_pad - batch), (0, in_pad - in_f)))

    grid = (b_pad // tm, out_pad // tn, in_pad // tk)

    x_spec = pl.BlockSpec((tm, tk), lambda i, j, k: (i, k))
    w_spec = pl.BlockSpec((tn, tk), lambda i, j, k: (j, k))
    ein_spec = pl.BlockSpec((1, tk), lambda i, j, k: (0, k))
    eout_spec = pl.BlockSpec((tn, 1), lambda i, j, k: (j, 0))
    b_spec = pl.BlockSpec((1, tn), lambda i, j, k: (0, j))
    o_spec = pl.BlockSpec((tm, tn), lambda i, j, k: (i, j))

    if training:
        kernel = _noisy_kernel
        inputs = (xp, params["weight_mu"], params["weight_sigma"],
                  params["eps_in"], params["eps_out"], bias)
        in_specs = [x_spec, w_spec, w_spec, ein_spec, eout_spec, b_spec]
        n_w = 2
    else:
        kernel = _mu_kernel
        inputs = (xp, params["weight_mu"], bias)
        in_specs = [x_spec, w_spec, b_spec]
        n_w = 1

    cost = pl.CostEstimate(
        flops=2 * b_pad * in_pad * out_pad,
        transcendentals=0,
        bytes_accessed=4 * (n_w * out_pad * in_pad * (b_pad // tm)
                            + b_pad * in_pad + b_pad * out_pad
                            + in_pad + 2 * out_pad))

    out_p = pl.pallas_call(
        kernel,
        out_shape=jax.ShapeDtypeStruct((b_pad, out_pad), jnp.float32),
        grid_spec=pltpu.PrefetchScalarGridSpec(
            num_scalar_prefetch=0,
            grid=grid,
            in_specs=in_specs,
            out_specs=o_spec),
        compiler_params=pltpu.CompilerParams(
            dimension_semantics=("parallel", "parallel", "arbitrary"),
            vmem_limit_bytes=32 * 1024 * 1024),
        cost_estimate=cost,
    )(*inputs)

    return out_p[:batch, :out_features].astype(x.dtype)


def init_noisy_linear_params(key, in_features, out_features, std_init=0.5):
    """Deterministic re-implementation of reset_parameters() + reset_noise().

    Returns the module's logical (unpadded) parameters plus the rank-1 noise
    factors eps_in / eps_out (weight_epsilon == outer(eps_out, eps_in),
    bias_epsilon == eps_out)."""
    k_wmu, k_bmu, k_ein, k_eout = jax.random.split(key, 4)
    mu_range = 1.0 / jnp.sqrt(jnp.float32(in_features))

    weight_mu = jax.random.uniform(
        k_wmu, (out_features, in_features), jnp.float32,
        minval=-mu_range, maxval=mu_range)
    weight_sigma = jnp.full((out_features, in_features),
                            std_init / jnp.sqrt(jnp.float32(in_features)),
                            jnp.float32)
    bias_mu = jax.random.uniform(
        k_bmu, (out_features,), jnp.float32, minval=-mu_range, maxval=mu_range)
    bias_sigma = jnp.full((out_features,),
                          std_init / jnp.sqrt(jnp.float32(out_features)),
                          jnp.float32)

    def scale_noise(k, size):
        v = jax.random.normal(k, (size,), jnp.float32)
        return jnp.sign(v) * jnp.sqrt(jnp.abs(v))

    eps_in = scale_noise(k_ein, in_features)
    eps_out = scale_noise(k_eout, out_features)

    return dict(weight_mu=weight_mu, weight_sigma=weight_sigma,
                bias_mu=bias_mu, bias_sigma=bias_sigma,
                eps_in=eps_in, eps_out=eps_out)


def pad_noisy_linear_params(params):
    """Pad params ONCE into the kernel's lane-dense canonical layout."""
    out_f, in_f = params["weight_mu"].shape
    in_pad = _round_up(in_f, 128)
    out_pad = _round_up(out_f, 128)

    def pad_w(w):
        return jnp.pad(w, ((0, out_pad - out_f), (0, in_pad - in_f)))

    def pad_vec(v, n):
        return jnp.pad(v, (0, n - v.shape[0]))

    return dict(
        weight_mu=pad_w(params["weight_mu"]),
        weight_sigma=pad_w(params["weight_sigma"]),
        eps_in=pad_vec(params["eps_in"], in_pad).reshape(1, in_pad),
        eps_out=pad_vec(params["eps_out"], out_pad).reshape(out_pad, 1),
        bias_mu=pad_vec(params["bias_mu"], out_pad).reshape(1, out_pad),
        bias_sigma=pad_vec(params["bias_sigma"], out_pad).reshape(1, out_pad),
        bias_eps=pad_vec(params["eps_out"], out_pad).reshape(1, out_pad),
    )


def _reference(x, params, training):
    w_eps = jnp.outer(params["eps_out"], params["eps_in"])
    if training:
        w = params["weight_mu"] + params["weight_sigma"] * w_eps
        b = params["bias_mu"] + params["bias_sigma"] * params["eps_out"]
    else:
        w = params["weight_mu"]
        b = params["bias_mu"]
    y = lax.dot_general(x, w, dimension_numbers=(((1,), (1,)), ((), ())),
                        precision=lax.Precision.HIGHEST)
    return y + b


if __name__ == "__main__":
    key = jax.random.PRNGKey(0)
    cases = [
        (8, 32, 64),       # small, aligned-ish (typical NoisyLinear usage)
        (13, 300, 200),    # ragged shapes -> exercises padding / slicing path
        (32, 768, 256),    # multi k-step accumulation + split j axis (v7x 2-TC)
    ]
    for (batch, in_f, out_f) in cases:
        k_param, k_x, key = jax.random.split(key, 3)
        params = init_noisy_linear_params(k_param, in_f, out_f, 0.5)
        padded = pad_noisy_linear_params(params)   # pad once, not per call
        x = jax.random.normal(k_x, (batch, in_f), jnp.float32)

        y_train = noisy_linear(x, padded, out_f, training=True)
        y_eval = noisy_linear(x, padded, out_f, training=False)
        jax.block_until_ready((y_train, y_eval))

        assert y_train.shape == (batch, out_f)
        assert y_eval.shape == (batch, out_f)
        assert jnp.allclose(y_train, _reference(x, params, True),
                            atol=1e-4, rtol=1e-4)
        assert jnp.allclose(y_eval, _reference(x, params, False),
                            atol=1e-4, rtol=1e-4)

    print("KERNEL_OK")
</pallas_src>

<mosaic_0001>
module attributes {stable_mosaic.version = 11 : i64} {
  func.func @_noisy_kernel(%arg0: i32, %arg1: i32, %arg2: i32, %arg3: memref<8x128xf32, #tpu.memory_space<vmem>>, %arg4: memref<128x128xf32, #tpu.memory_space<vmem>>, %arg5: memref<128x128xf32, #tpu.memory_space<vmem>>, %arg6: memref<1x128xf32, #tpu.memory_space<vmem>>, %arg7: memref<128x1xf32, #tpu.memory_space<vmem>>, %arg8: memref<1x128xf32, #tpu.memory_space<vmem>>, %arg9: memref<8x128xf32, #tpu.memory_space<vmem>>) attributes {dimension_semantics = [#tpu.dimension_semantics<parallel>, #tpu.dimension_semantics<parallel>, #tpu.dimension_semantics<arbitrary>], iteration_bounds = array<i64: 1, 1, 1>, scalar_prefetch = 0 : i64, scratch_operands = 0 : i64, tpu.core_type = #tpu.core_type<tc>, window_params = [{transform_indices = @transform_0, window_bounds = array<i64: 8, 128>}, {transform_indices = @transform_1, window_bounds = array<i64: 128, 128>}, {transform_indices = @transform_2, window_bounds = array<i64: 128, 128>}, {transform_indices = @transform_3, window_bounds = array<i64: 1, 128>}, {transform_indices = @transform_4, window_bounds = array<i64: 128, 1>}, {transform_indices = @transform_5, window_bounds = array<i64: 1, 128>}, {transform_indices = @transform_6, window_bounds = array<i64: 8, 128>}]} {
    %c0 = arith.constant 0 : index
    %c0_0 = arith.constant 0 : index
    %0 = vector.load %arg4[%c0, %c0_0] : memref<128x128xf32, #tpu.memory_space<vmem>>, vector<128x128xf32>
    %c0_1 = arith.constant 0 : index
    %c0_2 = arith.constant 0 : index
    %1 = vector.load %arg5[%c0_1, %c0_2] : memref<128x128xf32, #tpu.memory_space<vmem>>, vector<128x128xf32>
    %c0_3 = arith.constant 0 : index
    %c0_4 = arith.constant 0 : index
    %2 = vector.load %arg7[%c0_3, %c0_4] : memref<128x1xf32, #tpu.memory_space<vmem>>, vector<128x1xf32>
    %c0_5 = arith.constant 0 : index
    %c0_6 = arith.constant 0 : index
    %3 = vector.load %arg6[%c0_5, %c0_6] : memref<1x128xf32, #tpu.memory_space<vmem>>, vector<1x128xf32>
    %4 = vector.broadcast %2 : vector<128x1xf32> to vector<128x128xf32>
    %5 = vector.broadcast %3 : vector<1x128xf32> to vector<128x128xf32>
    %6 = arith.mulf %4, %5 : vector<128x128xf32>
    %7 = arith.mulf %1, %6 : vector<128x128xf32>
    %8 = arith.addf %0, %7 : vector<128x128xf32>
    %c0_7 = arith.constant 0 : index
    %c0_8 = arith.constant 0 : index
    %9 = vector.load %arg3[%c0_7, %c0_8] : memref<8x128xf32, #tpu.memory_space<vmem>>, vector<8x128xf32>
    %cst = arith.constant dense<0.000000e+00> : vector<8x128xf32>
    %10 = tpu.matmul %9, %8, %cst {dimension_numbers = #tpu.dot_dimension_numbers<[1], [1], [0], [0], [0, 0, 1, 0], [], []>} : vector<8x128xf32>, vector<128x128xf32>, vector<8x128xf32> -> vector<8x128xf32>
    %c0_i32 = arith.constant 0 : i32
    %11 = arith.cmpi eq, %arg2, %c0_i32 : i32
    %12 = arith.extui %11 : i1 to i32
    %c0_i32_9 = arith.constant 0 : i32
    %13 = arith.cmpi ne, %12, %c0_i32_9 : i32
    scf.if %13 {
      %c0_12 = arith.constant 0 : index
      %c0_13 = arith.constant 0 : index
      %17 = vector.load %arg8[%c0_12, %c0_13] : memref<1x128xf32, #tpu.memory_space<vmem>>, vector<1x128xf32>
      %18 = vector.broadcast %17 : vector<1x128xf32> to vector<8x128xf32>
      %19 = arith.addf %10, %18 : vector<8x128xf32>
      %c0_14 = arith.constant 0 : index
      %c0_15 = arith.constant 0 : index
      %20 = vector.load %arg9[%c0_14, %c0_15] : memref<8x128xf32, #tpu.memory_space<vmem>>, vector<8x128xf32>
      tpu.vector_store %arg9[%c0_14, %c0_15], %19 {strides = array<i32>} : memref<8x128xf32, #tpu.memory_space<vmem>>, vector<8x128xf32>,
    } else {
    }
    %c0_i32_10 = arith.constant 0 : i32
    %14 = arith.cmpi sgt, %arg2, %c0_i32_10 : i32
    %15 = arith.extui %14 : i1 to i32
    %c0_i32_11 = arith.constant 0 : i32
    %16 = arith.cmpi ne, %15, %c0_i32_11 : i32
    scf.if %16 {
      %c0_12 = arith.constant 0 : index
      %c0_13 = arith.constant 0 : index
      %17 = vector.load %arg9[%c0_12, %c0_13] : memref<8x128xf32, #tpu.memory_space<vmem>>, vector<8x128xf32>
      %18 = arith.addf %17, %10 : vector<8x128xf32>
      %c0_14 = arith.constant 0 : index
      %c0_15 = arith.constant 0 : index
      %19 = vector.load %arg9[%c0_14, %c0_15] : memref<8x128xf32, #tpu.memory_space<vmem>>, vector<8x128xf32>
      tpu.vector_store %arg9[%c0_14, %c0_15], %18 {strides = array<i32>} : memref<8x128xf32, #tpu.memory_space<vmem>>, vector<8x128xf32>,
    } else {
    }
    return
  }
  func.func @transform_0(%arg0: i32, %arg1: i32, %arg2: i32) -> (i32, i32) {
    %c0_i32 = arith.constant 0 : i32
    return %arg0, %arg2 : i32, i32
  }
  func.func @transform_1(%arg0: i32, %arg1: i32, %arg2: i32) -> (i32, i32) {
    %c0_i32 = arith.constant 0 : i32
    return %arg1, %arg2 : i32, i32
  }
  func.func @transform_2(%arg0: i32, %arg1: i32, %arg2: i32) -> (i32, i32) {
    %c0_i32 = arith.constant 0 : i32
    return %arg1, %arg2 : i32, i32
  }
  func.func @transform_3(%arg0: i32, %arg1: i32, %arg2: i32) -> (i32, i32) {
    %c0_i32 = arith.constant 0 : i32
    %c0_i32_0 = arith.constant 0 : i32
    return %c0_i32, %arg2 : i32, i32
  }
  func.func @transform_4(%arg0: i32, %arg1: i32, %arg2: i32) -> (i32, i32) {
    %c0_i32 = arith.constant 0 : i32
    %c0_i32_0 = arith.constant 0 : i32
    return %arg1, %c0_i32 : i32, i32
  }
  func.func @transform_5(%arg0: i32, %arg1: i32, %arg2: i32) -> (i32, i32) {
    %c0_i32 = arith.constant 0 : i32
    %c0_i32_0 = arith.constant 0 : i32
    return %c0_i32, %arg1 : i32, i32
  }
  func.func @transform_6(%arg0: i32, %arg1: i32, %arg2: i32) -> (i32, i32) {
    %c0_i32 = arith.constant 0 : i32
    return %arg0, %arg1 : i32, i32
  }
}

</mosaic_0001>

<llo_original>
// kernel: noisy_linear.1
$region0: #{noisy_linear.1}
  #allocation0 [shape = 'u32[]', space=smem, size = 0x4, offset = 0x4, fixed_abs, tag = 'smem constant byte address 0x4 - core index']
  #allocation1 [shape = 'u32[72,128]{1,0:T(1,128)}', space=vmem, size = 0x9000, scoped, tag = 'internal scratch']
  %s0 = inlined_call_operand.vmem [shape: f32[8,128], index: 0, kind: input, shape index: {}]
  %s1 = inlined_call_operand.vmem [shape: f32[128,128], index: 1, kind: input, shape index: {}]
  %s2 = inlined_call_operand.hbm [shape: f32[128,128], index: 2, kind: input, shape index: {}]
  %s3 = inlined_call_operand.vmem [shape: f32[1,128], index: 3, kind: input, shape index: {}]
  %s4 = inlined_call_operand.vmem [shape: f32[128,1], index: 4, kind: input, shape index: {}]
  %s5 = inlined_call_operand.vmem [shape: f32[1,128], index: 5, kind: input, shape index: {}]
  %s6 = inlined_call_operand.hbm [shape: f32[8,128], index: 6, kind: output, shape index: {}]
  %s7 = sld [smem:[#allocation0]]
  $region46: #{noisy_linear.1} parent=0
    _
  %s9 = ssub.s32 1, %s7
  %s10 = scalar_select 0, %s9, %s7
  $region1: #{noisy_linear.1} parent=0
    #allocation2 [shape = 'u8[65536]{0}', space=vmem, size = 0x10000, scoped, tag = 'input window, operand 2, single buffered']
    #allocation3 [shape = 's32[1]{0}', space=sflag, size = 0x4, scoped, tag = 'scoped memory for noisy_linear.1']
    #allocation4 [shape = 's32[1]{0}', space=sflag, size = 0x4, scoped, tag = 'scoped memory for noisy_linear.1']
    #allocation5 [shape = 'u8[4096]{0}', space=vmem, size = 0x1000, scoped, tag = 'output window, operand 0, single buffered']
    %11 = vsyncpa [#allocation3], 0
    %12 = vsyncpa [#allocation4], 0
    // Predicated region
    $region2: #{noisy_linear.1} parent=1 // pred_check
      _
    $region3: #{noisy_linear.1} parent=1 // pred_check_branch
      %14 = sbr.rel (0) target = $region5
    $region4: #{noisy_linear.1} parent=1 // pred_region
      _
    $region5: #{noisy_linear.1} parent=1 // pred_fallthru
      _
    // Predicated region
    $region6: #{noisy_linear.1} parent=1 // pred_check
      _
    $region7: #{noisy_linear.1} parent=1 // pred_check_branch
      %16 = sbr.rel (0) target = $region9
    $region8: #{noisy_linear.1} parent=1 // pred_region
      _
    $region9: #{noisy_linear.1} parent=1 // pred_fallthru
      _
    // Predicated region
    $region10: #{noisy_linear.1} parent=1 // pred_check
      _
    $region11: #{noisy_linear.1} parent=1 // pred_check_branch
      %18 = sbr.rel (0) target = $region13
    $region12: #{noisy_linear.1} parent=1 // pred_region
      %20 = vsyncadd [#allocation3], 0
      %s21 = sshll.u32 %s2, 4
      %s22 = int_to_ptr.hbm [resolvable:$true] %s21
      %s23 = sshll.u32 [#allocation2], 4
      %s24 = int_to_ptr.vmem [resolvable:$true] %s23
      %29 = dma.hbm_to_vmem [thread:$0]  %s22, 2048, %s24, [#allocation3], 128, 128, 8
    $region13: #{noisy_linear.1} parent=1 // pred_fallthru
      _
    // Predicated region
    $region14: #{noisy_linear.1} parent=1 // pred_check
      _
    $region15: #{noisy_linear.1} parent=1 // pred_check_branch
      %31 = sbr.rel (0) target = $region17
    $region16: #{noisy_linear.1} parent=1 // pred_region
      _
    $region17: #{noisy_linear.1} parent=1 // pred_fallthru
      _
    // Predicated region
    $region18: #{noisy_linear.1} parent=1 // pred_check
      _
    $region19: #{noisy_linear.1} parent=1 // pred_check_branch
      %33 = sbr.rel (0) target = $region21
    $region20: #{noisy_linear.1} parent=1 // pred_region
      _
    $region21: #{noisy_linear.1} parent=1 // pred_fallthru
      _
    // Predicated region
    $region22: #{noisy_linear.1} parent=1 // pred_check
      _
    $region23: #{noisy_linear.1} parent=1 // pred_check_branch
      %35 = sbr.rel (0) target = $region25
    $region24: #{noisy_linear.1} parent=1 // pred_region
      _
    $region25: #{noisy_linear.1} parent=1 // pred_fallthru
      _
    // Predicated region
    $region26: #{noisy_linear.1} parent=1 // pred_check
      _
    $region27: #{noisy_linear.1} parent=1 // pred_check_branch
      %37 = sbr.rel (0) target = $region29
    $region28: #{noisy_linear.1} parent=1 // pred_region
      %39 = dma.done [#allocation3], 2048
    $region29: #{noisy_linear.1} parent=1 // pred_fallthru
      _
    %v40 = vld [vmem:[%s1] sm:$0xff]
    %v41 = vld [vmem:[%s1 + $0x8] sm:$0xff]
    %v42 = vld [vmem:[%s1 + $0x10] sm:$0xff]
    %v43 = vld [vmem:[%s1 + $0x18] sm:$0xff]
    %v44 = vld [vmem:[%s1 + $0x20] sm:$0xff]
    %v45 = vld [vmem:[%s1 + $0x28] sm:$0xff]
    %v46 = vld [vmem:[%s1 + $0x30] sm:$0xff]
    %v47 = vld [vmem:[%s1 + $0x38] sm:$0xff]
    %v48 = vld [vmem:[%s1 + $0x40] sm:$0xff]
    %v49 = vld [vmem:[%s1 + $0x48] sm:$0xff]
    %v50 = vld [vmem:[%s1 + $0x50] sm:$0xff]
    %v51 = vld [vmem:[%s1 + $0x58] sm:$0xff]
    %v52 = vld [vmem:[%s1 + $0x60] sm:$0xff]
    %v53 = vld [vmem:[%s1 + $0x68] sm:$0xff]
    %v54 = vld [vmem:[%s1 + $0x70] sm:$0xff]
    %v55 = vld [vmem:[%s1 + $0x78] sm:$0xff]
    %v56 = vld [vmem:[#allocation2] sm:$0xff]
    %v57 = vld [vmem:[#allocation2 + $0x8] sm:$0xff]
    %v58 = vld [vmem:[#allocation2 + $0x10] sm:$0xff]
    %v59 = vld [vmem:[#allocation2 + $0x18] sm:$0xff]
    %v60 = vld [vmem:[#allocation2 + $0x20] sm:$0xff]
    %v61 = vld [vmem:[#allocation2 + $0x28] sm:$0xff]
    %v62 = vld [vmem:[#allocation2 + $0x30] sm:$0xff]
    %v63 = vld [vmem:[#allocation2 + $0x38] sm:$0xff]
    %v64 = vld [vmem:[#allocation2 + $0x40] sm:$0xff]
    %v65 = vld [vmem:[#allocation2 + $0x48] sm:$0xff]
    %v66 = vld [vmem:[#allocation2 + $0x50] sm:$0xff]
    %v67 = vld [vmem:[#allocation2 + $0x58] sm:$0xff]
    %v68 = vld [vmem:[#allocation2 + $0x60] sm:$0xff]
    %v69 = vld [vmem:[#allocation2 + $0x68] sm:$0xff]
    %v70 = vld [vmem:[#allocation2 + $0x70] sm:$0xff]
    %v71 = vld [vmem:[#allocation2 + $0x78] sm:$0xff]
    %v72 = vld [vmem:[%s4] sm:$0xff]
    %v73 = vld [vmem:[%s4 + $0x8] sm:$0xff]
    %v74 = vld [vmem:[%s4 + $0x10] sm:$0xff]
    %v75 = vld [vmem:[%s4 + $0x18] sm:$0xff]
    %v76 = vld [vmem:[%s4 + $0x20] sm:$0xff]
    %v77 = vld [vmem:[%s4 + $0x28] sm:$0xff]
    %v78 = vld [vmem:[%s4 + $0x30] sm:$0xff]
    %v79 = vld [vmem:[%s4 + $0x38] sm:$0xff]
    %v80 = vld [vmem:[%s4 + $0x40] sm:$0xff]
    %v81 = vld [vmem:[%s4 + $0x48] sm:$0xff]
    %v82 = vld [vmem:[%s4 + $0x50] sm:$0xff]
    %v83 = vld [vmem:[%s4 + $0x58] sm:$0xff]
    %v84 = vld [vmem:[%s4 + $0x60] sm:$0xff]
    %v85 = vld [vmem:[%s4 + $0x68] sm:$0xff]
    %v86 = vld [vmem:[%s4 + $0x70] sm:$0xff]
    %v87 = vld [vmem:[%s4 + $0x78] sm:$0xff]
    %v88 = vld [vmem:[%s3] sm:$0x1]
    %90 = vset.pattern.permute.xlu0 0
    %91 = vperm.xlu0 %90, %v72
    %v92 = vpop.permute.xlu0 %91
    %95 = vset.pattern.permute.xlu0 0
    %96 = vperm.xlu0 %95, %v73
    %v97 = vpop.permute.xlu0 %96
    %100 = vset.pattern.permute.xlu0 0
    %101 = vperm.xlu0 %100, %v74
    %v102 = vpop.permute.xlu0 %101
    %105 = vset.pattern.permute.xlu0 0
    %106 = vperm.xlu0 %105, %v75
    %v107 = vpop.permute.xlu0 %106
    %110 = vset.pattern.permute.xlu0 0
    %111 = vperm.xlu0 %110, %v76
    %v112 = vpop.permute.xlu0 %111
    %115 = vset.pattern.permute.xlu0 0
    %116 = vperm.xlu0 %115, %v77
    %v117 = vpop.permute.xlu0 %116
    %120 = vset.pattern.permute.xlu0 0
    %121 = vperm.xlu0 %120, %v78
    %v122 = vpop.permute.xlu0 %121
    %125 = vset.pattern.permute.xlu0 0
    %126 = vperm.xlu0 %125, %v79
    %v127 = vpop.permute.xlu0 %126
    %130 = vset.pattern.permute.xlu0 0
    %131 = vperm.xlu0 %130, %v80
    %v132 = vpop.permute.xlu0 %131
    %135 = vset.pattern.permute.xlu0 0
    %136 = vperm.xlu0 %135, %v81
    %v137 = vpop.permute.xlu0 %136
    %140 = vset.pattern.permute.xlu0 0
    %141 = vperm.xlu0 %140, %v82
    %v142 = vpop.permute.xlu0 %141
    %145 = vset.pattern.permute.xlu0 0
    %146 = vperm.xlu0 %145, %v83
    %v147 = vpop.permute.xlu0 %146
    %150 = vset.pattern.permute.xlu0 0
    %151 = vperm.xlu0 %150, %v84
    %v152 = vpop.permute.xlu0 %151
    %155 = vset.pattern.permute.xlu0 0
    %156 = vperm.xlu0 %155, %v85
    %v157 = vpop.permute.xlu0 %156
    %160 = vset.pattern.permute.xlu0 0
    %161 = vperm.xlu0 %160, %v86
    %v162 = vpop.permute.xlu0 %161
    %165 = vset.pattern.permute.xlu0 0
    %166 = vperm.xlu0 %165, %v87
    %v167 = vpop.permute.xlu0 %166
    %v170 = vperm.slane %v88, 0
    %v172 = vmul.f32 %v92, %v170
    %v173 = vmul.f32 %v97, %v170
    %v174 = vmul.f32 %v102, %v170
    %v175 = vmul.f32 %v107, %v170
    %v176 = vmul.f32 %v112, %v170
    %v177 = vmul.f32 %v117, %v170
    %v178 = vmul.f32 %v122, %v170
    %v179 = vmul.f32 %v127, %v170
    %v180 = vmul.f32 %v132, %v170
    %v181 = vmul.f32 %v137, %v170
    %v182 = vmul.f32 %v142, %v170
    %v183 = vmul.f32 %v147, %v170
    %v184 = vmul.f32 %v152, %v170
    %v185 = vmul.f32 %v157, %v170
    %v186 = vmul.f32 %v162, %v170
    %v187 = vmul.f32 %v167, %v170
    %v188 = vmul.f32 %v56, %v172
    %v189 = vmul.f32 %v57, %v173
    %v190 = vmul.f32 %v58, %v174
    %v191 = vmul.f32 %v59, %v175
    %v192 = vmul.f32 %v60, %v176
    %v193 = vmul.f32 %v61, %v177
    %v194 = vmul.f32 %v62, %v178
    %v195 = vmul.f32 %v63, %v179
    %v196 = vmul.f32 %v64, %v180
    %v197 = vmul.f32 %v65, %v181
    %v198 = vmul.f32 %v66, %v182
    %v199 = vmul.f32 %v67, %v183
    %v200 = vmul.f32 %v68, %v184
    %v201 = vmul.f32 %v69, %v185
    %v202 = vmul.f32 %v70, %v186
    %v203 = vmul.f32 %v71, %v187
    %v204 = vadd.f32 %v40, %v188
    %v205 = vadd.f32 %v41, %v189
    %v206 = vadd.f32 %v42, %v190
    %v207 = vadd.f32 %v43, %v191
    %v208 = vadd.f32 %v44, %v192
    %v209 = vadd.f32 %v45, %v193
    %v210 = vadd.f32 %v46, %v194
    %v211 = vadd.f32 %v47, %v195
    %v212 = vadd.f32 %v48, %v196
    %v213 = vadd.f32 %v49, %v197
    %v214 = vadd.f32 %v50, %v198
    %v215 = vadd.f32 %v51, %v199
    %v216 = vadd.f32 %v52, %v200
    %v217 = vadd.f32 %v53, %v201
    %v218 = vadd.f32 %v54, %v202
    %v219 = vadd.f32 %v55, %v203
    %v220 = vld [vmem:[%s0] sm:$0xff]
    %221 = vmatpush.xpose.msra.mxu0 %v219
    %222 = vmatpush.xpose.msra.mxu0 %v218
    %223 = vmatpush.xpose.msra.mxu0 %v217
    %224 = vmatpush.xpose.msra.mxu0 %v216
    %225 = vmatpush.xpose.msra.mxu0 %v215
    %226 = vmatpush.xpose.msra.mxu0 %v214
    %227 = vmatpush.xpose.msra.mxu0 %v213
    %228 = vmatpush.xpose.msra.mxu0 %v212
    %229 = vmatpush.xpose.msra.mxu0 %v211
    %230 = vmatpush.xpose.msra.mxu0 %v210
    %231 = vmatpush.xpose.msra.mxu0 %v209
    %232 = vmatpush.xpose.msra.mxu0 %v208
    %233 = vmatpush.xpose.msra.mxu0 %v207
    %234 = vmatpush.xpose.msra.mxu0 %v206
    %235 = vmatpush.xpose.msra.mxu0 %v205
    %236 = vmatpush.xpose.msra.mxu0 %v204
    %237 = vmatmul.f32.gmra.mxu0 %v220
    %v238 = vpop.f32.mrf.mxu0
    %v239 = vadd.f32 0.0, %v238
    %240 = vdwg.mxu0
    %p241 = scmp.eq.s32.totalorder 0, 0
    // Predicated region
    $region30: #{noisy_linear.1} parent=1 // pred_check
      %p242 = pneg %p241
    $region31: #{noisy_linear.1} parent=1 // pred_check_branch
      %244 = sbr.rel (%p242) target = $region33
    $region32: #{noisy_linear.1} parent=1 // pred_region
      %v245 = vld [vmem:[%s5] sm:$0x1]
      %v247 = vperm.slane %v245, 0
      %v249 = vadd.f32 %v239, %v247
      %250 = vst [vmem:[#allocation5] sm:$0xff] %v249
    $region33: #{noisy_linear.1} parent=1 // pred_fallthru
      _
    %p251 = scmp.gt.s32.totalorder 0, 0
    // Predicated region
    $region34: #{noisy_linear.1} parent=1 // pred_check
      %p252 = pneg %p251
    $region35: #{noisy_linear.1} parent=1 // pred_check_branch
      %254 = sbr.rel (%p252) target = $region37
    $region36: #{noisy_linear.1} parent=1 // pred_region
      %v255 = vld [vmem:[#allocation5] sm:$0xff]
      %v256 = vadd.f32 %v255, %v239
      %257 = vst [vmem:[#allocation5] sm:$0xff] %v256
    $region37: #{noisy_linear.1} parent=1 // pred_fallthru
      _
    // Predicated region
    $region38: #{noisy_linear.1} parent=1 // pred_check
      _
    $region39: #{noisy_linear.1} parent=1 // pred_check_branch
      %259 = sbr.rel (0) target = $region41
    $region40: #{noisy_linear.1} parent=1 // pred_region
      %261 = vsyncadd [#allocation4], 0
      %s263 = sshll.u32 [#allocation5], 4
      %s264 = int_to_ptr.vmem [resolvable:$true] %s263
      %s265 = sshll.u32 %s6, 4
      %s266 = int_to_ptr.hbm [resolvable:$true] %s265
      %268 = dma.vmem_to_hbm [thread:$0]  %s264, 128, %s266, [#allocation4]
    $region41: #{noisy_linear.1} parent=1 // pred_fallthru
      _
    // Predicated region
    $region42: #{noisy_linear.1} parent=1 // pred_check
      _
    $region43: #{noisy_linear.1} parent=1 // pred_check_branch
      %270 = sbr.rel (0) target = $region45
    $region44: #{noisy_linear.1} parent=1 // pred_region
      %272 = dma.done [#allocation4], 128
    $region45: #{noisy_linear.1} parent=1 // pred_fallthru
      _
    %273 = vsyncpa [#allocation3], 1
    %274 = vsyncpa [#allocation4], 1

</llo_original>
